<compile_context>
chip_gen: v6e
topology: v6e:2x2x1
jax: 0.10.0
libtpu: 0.0.40
codegen_flags: <defaults>
</compile_context>

<pallas_src>
import jax
import jax.numpy as jnp
from jax.experimental import pallas as pl
from jax.experimental.pallas import tpu as pltpu


def _delf_kernel(x_ref, w1_ref, b1_ref, w2_ref, b2_ref, o_ref):
    """x_ref:  (1, C, rt, 128)  VMEM   -- one batch item, all channels, a row-tile of pixels
       w1_ref: (C*Ch,)          SMEM   -- conv1 weight, row-major [c, j]
       b1_ref: (Ch,)            SMEM
       w2_ref: (Ch,)            SMEM   -- conv2 weight (Ch -> 1)
       b2_ref: (1,)             SMEM
       o_ref:  (1, rt, 128)     VMEM
    """
    C = x_ref.shape[1]
    Ch = b1_ref.shape[0]

    # Hoist every SMEM scalar read out of the vector-critical FMA chain.
    w1 = [[w1_ref[c * Ch + j] for j in range(Ch)] for c in range(C)]
    b1 = [b1_ref[j] for j in range(Ch)]
    w2 = [w2_ref[j] for j in range(Ch)]
    b2 = b2_ref[0]

    # conv1: c-outer loop -> each channel tile is loaded from VMEM exactly once and
    # accumulated into Ch running sums via scalar-broadcast FMAs on the VPU.
    h = [None] * Ch
    for c in range(C):
        xc = x_ref[0, c, :, :].astype(jnp.float32)   # widen bf16 -> f32 (no-op for f32)
        for j in range(Ch):
            t = xc * w1[c][j]
            h[j] = t if h[j] is None else h[j] + t

    # ReLU + conv2 (Ch -> 1).
    s = None
    for j in range(Ch):
        hj = jnp.maximum(h[j] + b1[j], 0.0)
        t = hj * w2[j]
        s = t if s is None else s + t
    s = s + b2

    # softplus(s) = max(s, 0) + log1p(exp(-|s|))   (stable, matches torch.nn.Softplus)
    o_ref[0, :, :] = (jnp.maximum(s, 0.0) + jnp.log1p(jnp.exp(-jnp.abs(s)))).astype(o_ref.dtype)


def delf_forward(x_nchw, w1, b1, w2, b2, *, rows_per_tile=1024, lane_width=128):
    """x_nchw: (N, C, H, W) f32 or bf16.  w1: (C, Ch), b1: (Ch,), w2: (Ch, 1), b2: (1,).
    Returns (N, 1, H, W) f32, same as the PyTorch DELF.forward (default config)."""
    N, C, H, W = x_nchw.shape
    Ch = w1.shape[1]
    P = H * W

    R0 = -(-P // lane_width)                      # cdiv: rows of 128-pixel lanes
    P_pad = R0 * lane_width
    needs_pad = (P_pad != P)

    # ---- row-tile size selection --------------------------------------------------
    if R0 <= rows_per_tile:
        rt = R0                                   # block == full dim (always legal)
    else:
        rt = rows_per_tile                        # multiple of 8 by construction
    # Keep >= 2 grid steps when possible so both v7x TensorCores get work.
    if N * (-(-R0 // rt)) < 2 and R0 > 8:
        rt = 8 * (-(-(-(-R0 // 2)) // 8))         # ~half the rows, rounded up to x8

    num_row_tiles = -(-R0 // rt)                  # ragged last tile handled by Pallas
    grid = (N, num_row_tiles)

    # ---- operand prep: reshapes are free; pad only if P % 128 != 0 -----------------
    x3 = x_nchw.reshape(N, C, P)
    if needs_pad:
        x3 = jnp.pad(x3, ((0, 0), (0, 0), (0, P_pad - P)))
    x4 = x3.reshape(N, C, R0, lane_width)

    # All 13 parameters as flat f32 scalars in SMEM.
    w1_flat = w1.reshape(-1).astype(jnp.float32)      # (C*Ch,), index c*Ch + j
    b1_flat = b1.reshape(-1).astype(jnp.float32)      # (Ch,)
    w2_flat = w2.reshape(-1).astype(jnp.float32)      # (Ch,)
    b2_flat = b2.reshape(-1).astype(jnp.float32)      # (1,)

    in_bytes = N * C * P * x_nchw.dtype.itemsize
    out_bytes = N * P * 4
    cost = pl.CostEstimate(
        flops=N * P * (2 * C * Ch + 2 * Ch + 4),
        transcendentals=2 * N * P,
        bytes_accessed=in_bytes + out_bytes,
    )

    compiler_params = pltpu.CompilerParams(
        dimension_semantics=("parallel", "parallel"),
        # If we had to pad, let XLA fuse the pad/reshape producer into the operand
        # fetch instead of materializing a padded copy of x in HBM.
        allow_input_fusion=([True, False, False, False, False] if needs_pad else None),
    )

    out = pl.pallas_call(
        _delf_kernel,
        out_shape=jax.ShapeDtypeStruct((N, R0, lane_width), jnp.float32),
        grid_spec=pltpu.PrefetchScalarGridSpec(
            num_scalar_prefetch=0,
            grid=grid,
            in_specs=[
                pl.BlockSpec((1, C, rt, lane_width), lambda n, t: (n, 0, t, 0)),  # x tile
                pl.BlockSpec(memory_space=pltpu.MemorySpace.SMEM),                # w1
                pl.BlockSpec(memory_space=pltpu.MemorySpace.SMEM),                # b1
                pl.BlockSpec(memory_space=pltpu.MemorySpace.SMEM),                # w2
                pl.BlockSpec(memory_space=pltpu.MemorySpace.SMEM),                # b2
            ],
            out_specs=pl.BlockSpec((1, rt, lane_width), lambda n, t: (n, t, 0)),
        ),
        compiler_params=compiler_params,
        cost_estimate=cost,
    )(x4, w1_flat, b1_flat, w2_flat, b2_flat)

    if needs_pad:
        out = out.reshape(N, P_pad)[:, :P]        # only path with a trailing slice
    return out.reshape(N, 1, H, W)


def _reference(x_nchw, w1, b1, w2, b2):
    """Pure-JAX reference of the same math (NCHW, 1x1 convs)."""
    N, C, H, W = x_nchw.shape
    xf = x_nchw.astype(jnp.float32).reshape(N, C, H * W)           # (N, C, P)
    h = jnp.einsum('ncp,ch->nhp', xf, w1) + b1[None, :, None]
    h = jnp.maximum(h, 0.0)
    s = jnp.einsum('nhp,ho->nop', h, w2) + b2[None, :, None]
    o = jnp.maximum(s, 0.0) + jnp.log1p(jnp.exp(-jnp.abs(s)))
    return o.reshape(N, 1, H, W)


if __name__ == "__main__":
    # Module config: numc_featmap=4, attention_type='use_default_input_feature',
    # attention_nonlinear='softplus', kernel=1.
    N, C = 2, 4
    Ch = C // 2

    key = jax.random.PRNGKey(0)
    kx, k1, kb1, k2, kb2 = jax.random.split(key, 5)

    # Conv 1x1 weights (out, in, 1, 1) represented directly as (in, out) matrices.
    w1 = jax.random.normal(k1, (C, Ch), dtype=jnp.float32) * (2.0 / (C + Ch)) ** 0.5
    b1 = jax.random.normal(kb1, (Ch,), dtype=jnp.float32) * 0.1
    w2 = jax.random.normal(k2, (Ch, 1), dtype=jnp.float32) * (2.0 / (Ch + 1)) ** 0.5
    b2 = jax.random.normal(kb2, (1,), dtype=jnp.float32) * 0.1

    # --- 1) main case: H*W % 128 == 0 -> zero-copy path ---------------------------
    H, W = 16, 16
    x = jax.random.normal(kx, (N, C, H, W), dtype=jnp.float32)
    out = jax.block_until_ready(delf_forward(x, w1, b1, w2, b2))
    ref = _reference(x, w1, b1, w2, b2)
    assert out.shape == (N, 1, H, W)
    assert jnp.allclose(out, ref, atol=1e-5, rtol=1e-5)

    # --- 2) ragged final row-tile (grid boundary masking), small rows_per_tile ----
    H2, W2 = 48, 48                                     # P = 2304 = 18 * 128, 18 % 8 != 0
    x2 = jax.random.normal(kx, (N, C, H2, W2), dtype=jnp.float32)
    out2 = jax.block_until_ready(delf_forward(x2, w1, b1, w2, b2, rows_per_tile=8))
    ref2 = _reference(x2, w1, b1, w2, b2)
    assert jnp.allclose(out2, ref2, atol=1e-5, rtol=1e-5)

    # --- 3) pad path (H*W % 128 != 0) with allow_input_fusion ---------------------
    H3, W3 = 10, 10                                     # P = 100 -> padded to 128
    x3 = jax.random.normal(kx, (N, C, H3, W3), dtype=jnp.float32)
    out3 = jax.block_until_ready(delf_forward(x3, w1, b1, w2, b2))
    ref3 = _reference(x3, w1, b1, w2, b2)
    assert jnp.allclose(out3, ref3, atol=1e-5, rtol=1e-5)

    # --- 4) bf16 input (halves HBM traffic); kernel widens to f32 internally ------
    xb = x.astype(jnp.bfloat16)
    outb = jax.block_until_ready(delf_forward(xb, w1, b1, w2, b2))
    refb = _reference(xb.astype(jnp.float32), w1, b1, w2, b2)
    assert jnp.allclose(outb, refb, atol=1e-5, rtol=1e-5)

    print("KERNEL_OK")
</pallas_src>

<mosaic_0001>
module attributes {stable_mosaic.version = 11 : i64} {
  func.func @_delf_kernel(%arg0: i32, %arg1: i32, %arg2: memref<1x4x2x128xf32, #tpu.memory_space<vmem>>, %arg3: memref<8xf32, #tpu.memory_space<smem>>, %arg4: memref<2xf32, #tpu.memory_space<smem>>, %arg5: memref<2xf32, #tpu.memory_space<smem>>, %arg6: memref<1xf32, #tpu.memory_space<smem>>, %arg7: memref<1x2x128xf32, #tpu.memory_space<vmem>>) attributes {dimension_semantics = [#tpu.dimension_semantics<parallel>, #tpu.dimension_semantics<parallel>], iteration_bounds = array<i64: 2, 1>, scalar_prefetch = 0 : i64, scratch_operands = 0 : i64, tpu.core_type = #tpu.core_type<tc>, window_params = [{transform_indices = @transform_0, window_bounds = array<i64: 1, 4, 2, 128>}, {transform_indices = @transform_1, window_bounds = array<i64: 8>}, {transform_indices = @transform_2, window_bounds = array<i64: 2>}, {transform_indices = @transform_3, window_bounds = array<i64: 2>}, {transform_indices = @transform_4, window_bounds = array<i64: 1>}, {transform_indices = @transform_5, window_bounds = array<i64: 1, 2, 128>}]} {
    %c0 = arith.constant 0 : index
    %0 = memref.load %arg3[%c0] : memref<8xf32, #tpu.memory_space<smem>>
    %c1 = arith.constant 1 : index
    %1 = memref.load %arg3[%c1] : memref<8xf32, #tpu.memory_space<smem>>
    %c2 = arith.constant 2 : index
    %2 = memref.load %arg3[%c2] : memref<8xf32, #tpu.memory_space<smem>>
    %c3 = arith.constant 3 : index
    %3 = memref.load %arg3[%c3] : memref<8xf32, #tpu.memory_space<smem>>
    %c4 = arith.constant 4 : index
    %4 = memref.load %arg3[%c4] : memref<8xf32, #tpu.memory_space<smem>>
    %c5 = arith.constant 5 : index
    %5 = memref.load %arg3[%c5] : memref<8xf32, #tpu.memory_space<smem>>
    %c6 = arith.constant 6 : index
    %6 = memref.load %arg3[%c6] : memref<8xf32, #tpu.memory_space<smem>>
    %c7 = arith.constant 7 : index
    %7 = memref.load %arg3[%c7] : memref<8xf32, #tpu.memory_space<smem>>
    %c0_0 = arith.constant 0 : index
    %8 = memref.load %arg4[%c0_0] : memref<2xf32, #tpu.memory_space<smem>>
    %c1_1 = arith.constant 1 : index
    %9 = memref.load %arg4[%c1_1] : memref<2xf32, #tpu.memory_space<smem>>
    %c0_2 = arith.constant 0 : index
    %10 = memref.load %arg5[%c0_2] : memref<2xf32, #tpu.memory_space<smem>>
    %c1_3 = arith.constant 1 : index
    %11 = memref.load %arg5[%c1_3] : memref<2xf32, #tpu.memory_space<smem>>
    %c0_4 = arith.constant 0 : index
    %12 = memref.load %arg6[%c0_4] : memref<1xf32, #tpu.memory_space<smem>>
    %c0_5 = arith.constant 0 : index
    %c0_6 = arith.constant 0 : index
    %c0_7 = arith.constant 0 : index
    %c0_8 = arith.constant 0 : index
    %13 = vector.load %arg2[%c0_5, %c0_6, %c0_7, %c0_8] : memref<1x4x2x128xf32, #tpu.memory_space<vmem>>, vector<1x1x2x128xf32>
    %14 = vector.shape_cast %13 : vector<1x1x2x128xf32> to vector<2x128xf32>
    %15 = vector.broadcast %0 : f32 to vector<2x128xf32>
    %16 = arith.mulf %14, %15 : vector<2x128xf32>
    %17 = vector.broadcast %1 : f32 to vector<2x128xf32>
    %18 = arith.mulf %14, %17 : vector<2x128xf32>
    %c0_9 = arith.constant 0 : index
    %c1_10 = arith.constant 1 : index
    %c0_11 = arith.constant 0 : index
    %c0_12 = arith.constant 0 : index
    %19 = vector.load %arg2[%c0_9, %c1_10, %c0_11, %c0_12] : memref<1x4x2x128xf32, #tpu.memory_space<vmem>>, vector<1x1x2x128xf32>
    %20 = vector.shape_cast %19 : vector<1x1x2x128xf32> to vector<2x128xf32>
    %21 = vector.broadcast %2 : f32 to vector<2x128xf32>
    %22 = arith.mulf %20, %21 : vector<2x128xf32>
    %23 = arith.addf %16, %22 : vector<2x128xf32>
    %24 = vector.broadcast %3 : f32 to vector<2x128xf32>
    %25 = arith.mulf %20, %24 : vector<2x128xf32>
    %26 = arith.addf %18, %25 : vector<2x128xf32>
    %c0_13 = arith.constant 0 : index
    %c2_14 = arith.constant 2 : index
    %c0_15 = arith.constant 0 : index
    %c0_16 = arith.constant 0 : index
    %27 = vector.load %arg2[%c0_13, %c2_14, %c0_15, %c0_16] : memref<1x4x2x128xf32, #tpu.memory_space<vmem>>, vector<1x1x2x128xf32>
    %28 = vector.shape_cast %27 : vector<1x1x2x128xf32> to vector<2x128xf32>
    %29 = vector.broadcast %4 : f32 to vector<2x128xf32>
    %30 = arith.mulf %28, %29 : vector<2x128xf32>
    %31 = arith.addf %23, %30 : vector<2x128xf32>
    %32 = vector.broadcast %5 : f32 to vector<2x128xf32>
    %33 = arith.mulf %28, %32 : vector<2x128xf32>
    %34 = arith.addf %26, %33 : vector<2x128xf32>
    %c0_17 = arith.constant 0 : index
    %c3_18 = arith.constant 3 : index
    %c0_19 = arith.constant 0 : index
    %c0_20 = arith.constant 0 : index
    %35 = vector.load %arg2[%c0_17, %c3_18, %c0_19, %c0_20] : memref<1x4x2x128xf32, #tpu.memory_space<vmem>>, vector<1x1x2x128xf32>
    %36 = vector.shape_cast %35 : vector<1x1x2x128xf32> to vector<2x128xf32>
    %37 = vector.broadcast %6 : f32 to vector<2x128xf32>
    %38 = arith.mulf %36, %37 : vector<2x128xf32>
    %39 = arith.addf %31, %38 : vector<2x128xf32>
    %40 = vector.broadcast %7 : f32 to vector<2x128xf32>
    %41 = arith.mulf %36, %40 : vector<2x128xf32>
    %42 = arith.addf %34, %41 : vector<2x128xf32>
    %43 = vector.broadcast %8 : f32 to vector<2x128xf32>
    %44 = arith.addf %39, %43 : vector<2x128xf32>
    %cst = arith.constant 0.000000e+00 : f32
    %45 = vector.broadcast %cst : f32 to vector<2x128xf32>
    %46 = arith.maximumf %44, %45 : vector<2x128xf32>
    %47 = vector.broadcast %10 : f32 to vector<2x128xf32>
    %48 = arith.mulf %46, %47 : vector<2x128xf32>
    %49 = vector.broadcast %9 : f32 to vector<2x128xf32>
    %50 = arith.addf %42, %49 : vector<2x128xf32>
    %cst_21 = arith.constant 0.000000e+00 : f32
    %51 = vector.broadcast %cst_21 : f32 to vector<2x128xf32>
    %52 = arith.maximumf %50, %51 : vector<2x128xf32>
    %53 = vector.broadcast %11 : f32 to vector<2x128xf32>
    %54 = arith.mulf %52, %53 : vector<2x128xf32>
    %55 = arith.addf %48, %54 : vector<2x128xf32>
    %56 = vector.broadcast %12 : f32 to vector<2x128xf32>
    %57 = arith.addf %55, %56 : vector<2x128xf32>
    %cst_22 = arith.constant 0.000000e+00 : f32
    %58 = vector.broadcast %cst_22 : f32 to vector<2x128xf32>
    %59 = arith.maximumf %57, %58 : vector<2x128xf32>
    %60 = math.absf %57 : vector<2x128xf32>
    %cst_23 = arith.constant 0.000000e+00 : f32
    %61 = vector.broadcast %cst_23 : f32 to vector<2x128xf32>
    %62 = arith.subf %61, %60 : vector<2x128xf32>
    %63 = math.exp %62 : vector<2x128xf32>
    %64 = math.log1p %63 : vector<2x128xf32>
    %65 = arith.addf %59, %64 : vector<2x128xf32>
    %c0_24 = arith.constant 0 : index
    %c0_25 = arith.constant 0 : index
    %c0_26 = arith.constant 0 : index
    %66 = vector.load %arg7[%c0_24, %c0_25, %c0_26] : memref<1x2x128xf32, #tpu.memory_space<vmem>>, vector<1x2x128xf32>
    %67 = vector.shape_cast %66 : vector<1x2x128xf32> to vector<2x128xf32>
    %68 = vector.shape_cast %65 : vector<2x128xf32> to vector<1x2x128xf32>
    tpu.vector_store %arg7[%c0_24, %c0_25, %c0_26], %68 {strides = array<i32>} : memref<1x2x128xf32, #tpu.memory_space<vmem>>, vector<1x2x128xf32>,
    return
  }
  func.func @transform_0(%arg0: i32, %arg1: i32) -> (i32, i32, i32, i32) {
    %c0_i32 = arith.constant 0 : i32
    %c0_i32_0 = arith.constant 0 : i32
    %c0_i32_1 = arith.constant 0 : i32
    return %arg0, %c0_i32, %arg1, %c0_i32_0 : i32, i32, i32, i32
  }
  func.func @transform_1(%arg0: i32, %arg1: i32) -> i32 {
    %c0_i32 = arith.constant 0 : i32
    %c0_i32_0 = arith.constant 0 : i32
    return %c0_i32 : i32
  }
  func.func @transform_2(%arg0: i32, %arg1: i32) -> i32 {
    %c0_i32 = arith.constant 0 : i32
    %c0_i32_0 = arith.constant 0 : i32
    return %c0_i32 : i32
  }
  func.func @transform_3(%arg0: i32, %arg1: i32) -> i32 {
    %c0_i32 = arith.constant 0 : i32
    %c0_i32_0 = arith.constant 0 : i32
    return %c0_i32 : i32
  }
  func.func @transform_4(%arg0: i32, %arg1: i32) -> i32 {
    %c0_i32 = arith.constant 0 : i32
    %c0_i32_0 = arith.constant 0 : i32
    return %c0_i32 : i32
  }
  func.func @transform_5(%arg0: i32, %arg1: i32) -> (i32, i32, i32) {
    %c0_i32 = arith.constant 0 : i32
    %c0_i32_0 = arith.constant 0 : i32
    return %arg0, %arg1, %c0_i32 : i32, i32, i32
  }
}

</mosaic_0001>

<llo_original>
// kernel: tpu_custom_call.1
$region0: #{tpu_custom_call.1}
  #allocation0 [shape = 'u32[]', space=smem, size = 0x4, offset = 0x4, fixed_abs, tag = 'smem constant byte address 0x4 - core index']
  #allocation1 [shape = 'u32[144,128]{1,0:T(1,128)}', space=vmem, size = 0x12000, scoped, tag = 'internal scratch']
  #allocation2 [shape = 'f32[1]{0:T(128)S(6)}', space=smem, size = 0x200, scoped, tag = 'scoped memory for tpu_custom_call.1']
  %s0 = inlined_call_operand.hbm [shape: f32[2,4,2,128], index: 0, kind: input, shape index: {}]
  %s1 = inlined_call_operand.vmem [shape: f32[8], index: 1, kind: input, shape index: {}]
  %s2 = inlined_call_operand.vmem [shape: f32[2], index: 2, kind: input, shape index: {}]
  %s3 = inlined_call_operand.vmem [shape: f32[2], index: 3, kind: input, shape index: {}]
  %s4 = inlined_call_operand.<no memory space> [shape: f32[1], index: 4, kind: input, shape index: {}]
  %s5 = inlined_call_operand.hbm [shape: f32[2,2,128], index: 5, kind: output, shape index: {}]
  %s6 = sld [smem:[#allocation0]]
  $region69: #{tpu_custom_call.1} parent=0
    _
  %s8 = ssub.s32 1, %s6
  %s9 = scalar_select 0, %s8, %s6
  %10 = sst [smem:[#allocation2]] %s4
  $region1: #{tpu_custom_call.1} parent=0
    #allocation3 [shape = 'u8[8192]{0}', space=vmem, size = 0x2000, scoped, tag = 'input window, operand 0']
    #allocation4 [shape = 's32[2]{0}', space=sflag, size = 0x8, scoped, tag = 'scoped memory for tpu_custom_call.1']
    #allocation5 [shape = 's32[2]{0}', space=sflag, size = 0x8, scoped, tag = 'scoped memory for tpu_custom_call.1']
    #allocation6 [shape = 's32[2]{0}', space=sflag, size = 0x8, scoped, tag = 'scoped memory for tpu_custom_call.1']
    #allocation7 [shape = 'u8[512]{0}', space=smem, size = 0x200, scoped, tag = 'input window, operand 1, single buffered']
    #allocation8 [shape = 'u8[512]{0}', space=smem, size = 0x200, scoped, tag = 'input window, operand 2, single buffered']
    #allocation9 [shape = 's32[1]{0}', space=sflag, size = 0x4, scoped, tag = 'scoped memory for tpu_custom_call.1']
    #allocation10 [shape = 'u8[512]{0}', space=smem, size = 0x200, scoped, tag = 'input window, operand 3, single buffered']
    #allocation11 [shape = 'u8[2048]{0}', space=vmem, size = 0x800, scoped, tag = 'output window, operand 0']
    %11 = vsyncpa [#allocation4], 0
    %s12 = scalar_lea.sflag [#allocation4], 1
    %13 = vsyncpa %s12, 0
    %14 = vsyncpa [#allocation6], 0
    %15 = vsyncpa [#allocation9], 0
    %16 = vsyncpa [#allocation5], 0
    %s17 = scalar_lea.sflag [#allocation5], 1
    %18 = vsyncpa %s17, 0
    loop: start=0, step=1, limit=4
    $region2: #{tpu_custom_call.1} parent=1 // loop_pre_header
      _
    $region3: #{tpu_custom_call.1} parent=1 // loop_header
      %s20 = sphi 0, %s24
      %p21 = scmp.ge.s32.totalorder %s20, 4
      %s27 = sphi 0, %s39
      %s28 = sphi 0, %s35
      %s29 = sphi 0, %s27
      %s30 = sphi 0, %s28
      %s31 = sphi 0, %s29
      %s32 = sphi 0, %s30
      %s44 = sphi 0, %s46
      %s47 = sphi 0, %s44
      %s48 = sphi 0, %s47
      %s64 = sphi 0, %s48
      %s68 = sphi 0, %s68
      %s70 = sphi 0, %s68
      %s71 = sphi 0, %s70
      %s85 = sphi 0, %s71
      %s89 = sphi 0, %s89
      %s91 = sphi 0, %s89
      %s92 = sphi 0, %s91
      %s106 = sphi 0, %s92
      %s110 = sphi 0, %s110
      %s112 = sphi 0, %s110
      %s113 = sphi 0, %s112
      %s127 = sphi 0, %s113
      %s131 = sphi 0, %s131
      %s133 = sphi 0, %s131
      %s134 = sphi 0, %s133
      %s148 = sphi 0, %s134
      %s156 = sphi 0, %s158
      %s159 = sphi 0, %s156
      %s160 = sphi 0, %s159
      %s176 = sphi 0, %s160
    $region4: #{tpu_custom_call.1} parent=1 // loop_header_branch
      %23 = sbr.rel (%p21) target = $region8
    $region5: #{tpu_custom_call.1} parent=1 // loop_body
      %s25 = ssub.s32 %s20, 1
      %s26 = ssub.s32 %s20, 2
      %s33 = sadd.s32 1, %s28
      %p34 = scmp.ge.s32.totalorder %s33, 1
      %s35 = scalar_select %p34, 0, %s33
      %s36 = sadd.s32 1, %s27
      %s37 = scalar_select %p34, %s36, %s27
      %p38 = scmp.ge.s32.totalorder %s37, 2
      %s39 = scalar_select %p38, 0, %s37
      %s40 = ssub.s32 %s27, %s39
      %s41 = ssub.s32 %s28, %s35
      %s42 = sor.u32 %s40, %s41
      %p43 = scmp.eq.s32.totalorder %s42, 0
      %s45 = sadd.s32 %s44, 1
      %s46 = scalar_select %p43, %s44, %s45
      %p49 = pneg %p43
      %p50 = scmp.eq.s32.totalorder %s20, 1
      %p51 = por %p49, %p50
      %p52 = scmp.ne.s32.totalorder %s44, %s47
      %p53 = scmp.eq.s32.totalorder %s20, 0
      %p54 = por %p52, %p53
      %p55 = scmp.ne.s32.totalorder %s44, %s47
      %p56 = scmp.eq.s32.totalorder %s25, 1
      %p57 = por %p55, %p56
      %p58 = scmp.ne.s32.totalorder %s47, %s48
      %p59 = scmp.eq.s32.totalorder %s25, 0
      %p60 = por %p58, %p59
      %p61 = scmp.ne.s32.totalorder %s47, %s48
      %p62 = scmp.eq.s32.totalorder %s26, 1
      %p63 = por %p61, %p62
      %p65 = scmp.ne.s32.totalorder %s48, %s64
      %p66 = scmp.eq.s32.totalorder %s26, 0
      %p67 = por %p65, %p66
      %s69 = sadd.s32 %s68, 1
      %p72 = scmp.eq.s32.totalorder %s20, 1
      %p73 = scmp.ne.s32.totalorder %s68, %s70
      %p74 = scmp.eq.s32.totalorder %s20, 0
      %p75 = por %p73, %p74
      %p76 = scmp.ne.s32.totalorder %s68, %s70
      %p77 = scmp.eq.s32.totalorder %s25, 1
      %p78 = por %p76, %p77
      %p79 = scmp.ne.s32.totalorder %s70, %s71
      %p80 = scmp.eq.s32.totalorder %s25, 0
      %p81 = por %p79, %p80
      %p82 = scmp.ne.s32.totalorder %s70, %s71
      %p83 = scmp.eq.s32.totalorder %s26, 1
      %p84 = por %p82, %p83
      %p86 = scmp.ne.s32.totalorder %s71, %s85
      %p87 = scmp.eq.s32.totalorder %s26, 0
      %p88 = por %p86, %p87
      %s90 = sadd.s32 %s89, 1
      %p93 = scmp.eq.s32.totalorder %s20, 1
      %p94 = scmp.ne.s32.totalorder %s89, %s91
      %p95 = scmp.eq.s32.totalorder %s20, 0
      %p96 = por %p94, %p95
      %p97 = scmp.ne.s32.totalorder %s89, %s91
      %p98 = scmp.eq.s32.totalorder %s25, 1
      %p99 = por %p97, %p98
      %p100 = scmp.ne.s32.totalorder %s91, %s92
      %p101 = scmp.eq.s32.totalorder %s25, 0
      %p102 = por %p100, %p101
      %p103 = scmp.ne.s32.totalorder %s91, %s92
      %p104 = scmp.eq.s32.totalorder %s26, 1
      %p105 = por %p103, %p104
      %p107 = scmp.ne.s32.totalorder %s92, %s106
      %p108 = scmp.eq.s32.totalorder %s26, 0
      %p109 = por %p107, %p108
      %s111 = sadd.s32 %s110, 1
      %p114 = scmp.eq.s32.totalorder %s20, 1
      %p115 = scmp.ne.s32.totalorder %s110, %s112
      %p116 = scmp.eq.s32.totalorder %s20, 0
      %p117 = por %p115, %p116
      %p118 = scmp.ne.s32.totalorder %s110, %s112
      %p119 = scmp.eq.s32.totalorder %s25, 1
      %p120 = por %p118, %p119
      %p121 = scmp.ne.s32.totalorder %s112, %s113
      %p122 = scmp.eq.s32.totalorder %s25, 0
      %p123 = por %p121, %p122
      %p124 = scmp.ne.s32.totalorder %s112, %s113
      %p125 = scmp.eq.s32.totalorder %s26, 1
      %p126 = por %p124, %p125
      %p128 = scmp.ne.s32.totalorder %s113, %s127
      %p129 = scmp.eq.s32.totalorder %s26, 0
      %p130 = por %p128, %p129
      %s132 = sadd.s32 %s131, 1
      %p135 = scmp.eq.s32.totalorder %s20, 1
      %p136 = scmp.ne.s32.totalorder %s131, %s133
      %p137 = scmp.eq.s32.totalorder %s20, 0
      %p138 = por %p136, %p137
      %p139 = scmp.ne.s32.totalorder %s131, %s133
      %p140 = scmp.eq.s32.totalorder %s25, 1
      %p141 = por %p139, %p140
      %p142 = scmp.ne.s32.totalorder %s133, %s134
      %p143 = scmp.eq.s32.totalorder %s25, 0
      %p144 = por %p142, %p143
      %p145 = scmp.ne.s32.totalorder %s133, %s134
      %p146 = scmp.eq.s32.totalorder %s26, 1
      %p147 = por %p145, %p146
      %p149 = scmp.ne.s32.totalorder %s134, %s148
      %p150 = scmp.eq.s32.totalorder %s26, 0
      %p151 = por %p149, %p150
      %s152 = ssub.s32 %s27, %s39
      %s153 = ssub.s32 %s28, %s35
      %s154 = sor.u32 %s152, %s153
      %p155 = scmp.eq.s32.totalorder %s154, 0
      %s157 = sadd.s32 %s156, 1
      %s158 = scalar_select %p155, %s156, %s157
      %p161 = pneg %p155
      %p162 = scmp.eq.s32.totalorder %s20, 1
      %p163 = por %p161, %p162
      %p164 = scmp.ne.s32.totalorder %s156, %s159
      %p165 = scmp.eq.s32.totalorder %s20, 0
      %p166 = por %p164, %p165
      %p167 = scmp.ne.s32.totalorder %s156, %s159
      %p168 = scmp.eq.s32.totalorder %s25, 1
      %p169 = por %p167, %p168
      %p170 = scmp.ne.s32.totalorder %s159, %s160
      %p171 = scmp.eq.s32.totalorder %s25, 0
      %p172 = por %p170, %p171
      %p173 = scmp.ne.s32.totalorder %s159, %s160
      %p174 = scmp.eq.s32.totalorder %s26, 1
      %p175 = por %p173, %p174
      %p177 = scmp.ne.s32.totalorder %s160, %s176
      %p178 = scmp.eq.s32.totalorder %s26, 0
      %p179 = por %p177, %p178
      %p180 = scmp.le.s32.totalorder 1, %s20
      %p181 = scmp.lt.s32.totalorder %s20, 3
      %p182 = pnand %p180, %p181
      %p183 = pneg %p182
      // Predicated region
      $region9: #{tpu_custom_call.1} parent=5 // pred_check
        _
      $region10: #{tpu_custom_call.1} parent=5 // pred_check_branch
        %185 = sbr.rel (%p182) target = $region12
      $region11: #{tpu_custom_call.1} parent=5 // pred_region
        %s186 = ssub.s32 %s20, 1
        // Predicated region
        $region13: #{tpu_custom_call.1} parent=11 // pred_check
          %p187 = pneg %p81
        $region14: #{tpu_custom_call.1} parent=11 // pred_check_branch
          %189 = sbr.rel (%p187) target = $region16
        $region15: #{tpu_custom_call.1} parent=11 // pred_region
          %s191 = ssub.s32 16, 16
          %192 = vsyncadd [#allocation6], %s191
          %s194 = sshll.u32 %s1, 4
          %s195 = int_to_ptr.vmem [resolvable:$true] %s194
          %197 = dma.vmem_to_smem %s195, 16, [#allocation7], [#allocation6]
        $region16: #{tpu_custom_call.1} parent=11 // pred_fallthru
          _
        // Predicated region
        $region17: #{tpu_custom_call.1} parent=11 // pred_check
          %p198 = pneg %p102
        $region18: #{tpu_custom_call.1} parent=11 // pred_check_branch
          %200 = sbr.rel (%p198) target = $region20
        $region19: #{tpu_custom_call.1} parent=11 // pred_region
          %s202 = ssub.s32 16, 16
          %203 = vsyncadd [#allocation9], %s202
          %s205 = sshll.u32 %s2, 4
          %s206 = int_to_ptr.vmem [resolvable:$true] %s205
          %208 = dma.vmem_to_smem %s206, 16, [#allocation8], [#allocation9]
        $region20: #{tpu_custom_call.1} parent=11 // pred_fallthru
          _
        // Predicated region
        $region21: #{tpu_custom_call.1} parent=11 // pred_check
          %p209 = pneg %p123
        $region22: #{tpu_custom_call.1} parent=11 // pred_check_branch
          %211 = sbr.rel (%p209) target = $region24
        $region23: #{tpu_custom_call.1} parent=11 // pred_region
          %s213 = ssub.s32 16, 16
          %214 = vsyncadd [#allocation9], %s213
          %s216 = sshll.u32 %s3, 4
          %s217 = int_to_ptr.vmem [resolvable:$true] %s216
          %219 = dma.vmem_to_smem %s217, 16, [#allocation10], [#allocation9]
        $region24: #{tpu_custom_call.1} parent=11 // pred_fallthru
          _
        // Predicated region
        $region25: #{tpu_custom_call.1} parent=11 // pred_check
          %p220 = pneg %p144
        $region26: #{tpu_custom_call.1} parent=11 // pred_check_branch
          %222 = sbr.rel (%p220) target = $region28
        $region27: #{tpu_custom_call.1} parent=11 // pred_region
          _
        $region28: #{tpu_custom_call.1} parent=11 // pred_fallthru
          _
      $region12: #{tpu_custom_call.1} parent=5 // pred_fallthru
        _
      %p223 = scmp.lt.s32.totalorder %s20, 2
      // Predicated region
      $region29: #{tpu_custom_call.1} parent=5 // pred_check
        %p224 = pneg %p223
      $region30: #{tpu_custom_call.1} parent=5 // pred_check_branch
        %226 = sbr.rel (%p224) target = $region32
      $region31: #{tpu_custom_call.1} parent=5 // pred_region
        // Predicated region
        $region33: #{tpu_custom_call.1} parent=31 // pred_check
          %p227 = pneg %p54
        $region34: #{tpu_custom_call.1} parent=31 // pred_check_branch
          %229 = sbr.rel (%p227) target = $region36
        $region35: #{tpu_custom_call.1} parent=31 // pred_region
          %s230 = sand.u32 %s44, 1
          %s231 = scalar_lea.sflag [#allocation4], %s230
          %s232 = sand.u32 %s44, 1
          %s233 = smul.addr %s232, 8
          %s234 = scalar_lea.vmem [#allocation3], %s233
          %s236 = ssub.s32 128, 128
          %237 = vsyncadd %s231, %s236
          %s238 = smul.addr %s27, 4
          %s239 = sadd.s32 %s28, %s238
          %s240 = smul.addr %s239, 32
          %s241 = scalar_lea.hbm %s0, %s240
          %s242 = sshll.u32 %s234, 4
          %s243 = int_to_ptr.vmem [resolvable:$true] %s242
          %248 = dma.hbm_to_vmem [thread:$0]  %s241, 128, %s243, %s231, 32, 32, 2
        $region36: #{tpu_custom_call.1} parent=31 // pred_fallthru
          _
      $region32: #{tpu_custom_call.1} parent=5 // pred_fallthru
        _
      %p249 = scmp.le.s32.totalorder 1, %s20
      %p250 = scmp.lt.s32.totalorder %s20, 3
      %p251 = pnand %p249, %p250
      %p252 = pneg %p251
      // Predicated region
      $region37: #{tpu_custom_call.1} parent=5 // pred_check
        _
      $region38: #{tpu_custom_call.1} parent=5 // pred_check_branch
        %254 = sbr.rel (%p251) target = $region40
      $region39: #{tpu_custom_call.1} parent=5 // pred_region
        %s255 = ssub.s32 %s20, 1
        %s256 = sand.u32 %s47, 1
        %s257 = scalar_lea.sflag [#allocation4], %s256
        %s258 = sand.u32 %s47, 1
        %s259 = smul.addr %s258, 8
        %s260 = scalar_lea.vmem [#allocation3], %s259
        // Predicated region
        $region41: #{tpu_custom_call.1} parent=39 // pred_check
          %p261 = pneg %p60
        $region42: #{tpu_custom_call.1} parent=39 // pred_check_branch
          %263 = sbr.rel (%p261) target = $region44
        $region43: #{tpu_custom_call.1} parent=39 // pred_region
          %264 = dma.done %s257, 128
        $region44: #{tpu_custom_call.1} parent=39 // pred_fallthru
          _
        // Predicated region
        $region45: #{tpu_custom_call.1} parent=39 // pred_check
          %p265 = pneg %p81
        $region46: #{tpu_custom_call.1} parent=39 // pred_check_branch
          %267 = sbr.rel (%p265) target = $region48
        $region47: #{tpu_custom_call.1} parent=39 // pred_region
          %268 = dma.done [#allocation6], 16
        $region48: #{tpu_custom_call.1} parent=39 // pred_fallthru
          _
        // Predicated region
        $region49: #{tpu_custom_call.1} parent=39 // pred_check
          %p269 = pneg %p102
        $region50: #{tpu_custom_call.1} parent=39 // pred_check_branch
          %271 = sbr.rel (%p269) target = $region52
        $region51: #{tpu_custom_call.1} parent=39 // pred_region
          %272 = dma.done [#allocation9], 16
        $region52: #{tpu_custom_call.1} parent=39 // pred_fallthru
          _
        // Predicated region
        $region53: #{tpu_custom_call.1} parent=39 // pred_check
          %p273 = pneg %p123
        $region54: #{tpu_custom_call.1} parent=39 // pred_check_branch
          %275 = sbr.rel (%p273) target = $region56
        $region55: #{tpu_custom_call.1} parent=39 // pred_region
          %276 = dma.done [#allocation9], 16
        $region56: #{tpu_custom_call.1} parent=39 // pred_fallthru
          _
        %277 = sfence
        %s278 = sand.u32 %s47, 1
        %s279 = scalar_lea.sflag [#allocation4], %s278
        %s280 = sand.u32 %s47, 1
        %s281 = smul.addr %s280, 8
        %s282 = scalar_lea.vmem [#allocation3], %s281
        %p283 = pneg %p60
        %p284 = pneg %p57
        %p285 = pneg %p81
        %p286 = pneg %p78
        %p287 = pneg %p102
        %p288 = pneg %p99
        %p289 = pneg %p123
        %p290 = pneg %p120
        %p291 = pneg %p144
        %p292 = pneg %p141
        %p293 = pneg %p172
        %p294 = pneg %p169
        %s295 = sand.u32 %s159, 1
        %s296 = scalar_lea.sflag [#allocation5], %s295
        %s297 = sand.u32 %s159, 1
        %s298 = smul.addr %s297, 2
        %s299 = scalar_lea.vmem [#allocation11], %s298
        %s300 = sld [smem:[#allocation7]]
        %s301 = sld [smem:[#allocation7 + $0x1]]
        %s302 = sld [smem:[#allocation7 + $0x2]]
        %s303 = sld [smem:[#allocation7 + $0x3]]
        %s304 = sld [smem:[#allocation7 + $0x4]]
        %s305 = sld [smem:[#allocation7 + $0x5]]
        %s306 = sld [smem:[#allocation7 + $0x6]]
        %s307 = sld [smem:[#allocation7 + $0x7]]
        %s308 = sld [smem:[#allocation8]]
        %s309 = sld [smem:[#allocation8 + $0x1]]
        %s310 = sld [smem:[#allocation10]]
        %s311 = sld [smem:[#allocation10 + $0x1]]
        %s312 = sld [smem:[#allocation2]]
        %v313 = vld [vmem:[%s260] sm:$0x3]
        %v314 = vstv %s300
        %v315 = vmul.f32 %v313, %v314
        %v316 = vstv %s301
        %v317 = vmul.f32 %v313, %v316
        %s318 = scalar_lea.vmem %s260, 2 [#allocation3]
        %v319 = vld [vmem:[%s318] sm:$0x3]
        %v320 = vstv %s302
        %v321 = vmul.f32 %v319, %v320
        %v322 = vadd.f32 %v315, %v321
        %v323 = vstv %s303
        %v324 = vmul.f32 %v319, %v323
        %v325 = vadd.f32 %v317, %v324
        %s326 = scalar_lea.vmem %s260, 4 [#allocation3]
        %v327 = vld [vmem:[%s326] sm:$0x3]
        %v328 = vstv %s304
        %v329 = vmul.f32 %v327, %v328
        %v330 = vadd.f32 %v322, %v329
        %v331 = vstv %s305
        %v332 = vmul.f32 %v327, %v331
        %v333 = vadd.f32 %v325, %v332
        %s334 = scalar_lea.vmem %s260, 6 [#allocation3]
        %v335 = vld [vmem:[%s334] sm:$0x3]
        %v336 = vstv %s306
        %v337 = vmul.f32 %v335, %v336
        %v338 = vadd.f32 %v330, %v337
        %v339 = vstv %s307
        %v340 = vmul.f32 %v335, %v339
        %v341 = vadd.f32 %v333, %v340
        %v342 = vstv %s308
        %v343 = vadd.f32 %v338, %v342
        %v344 = vmax.f32 %v343, 0.0
        %v345 = vstv %s310
        %v346 = vmul.f32 %v344, %v345
        %v347 = vstv %s309
        %v348 = vadd.f32 %v341, %v347
        %v349 = vmax.f32 %v348, 0.0
        %v350 = vstv %s311
        %v351 = vmul.f32 %v349, %v350
        %v352 = vadd.f32 %v346, %v351
        %v353 = vstv %s312
        %v354 = vadd.f32 %v352, %v353
        %v355 = vmax.f32 %v354, 0.0
        %v356 = vand.u32 2147483647, %v354
        %v357 = vsub.f32 0.0, %v356
        %v358 = vmul.f32 %v357, 1.442695
        %v359 = vpow.pop %v358
        %v360 = vadd.f32 %v359, 1.0
        %v361 = vlog2.pop %v360
        %v362 = vmul.f32 %v361, 0.6931472
        %v363 = vmul.f32 -0.5, %v359
        %v364 = vadd.f32 %v363, 1.0
        %v365 = vmul.f32 %v364, %v359
        %v366 = vand.u32 2147483647, %v359
        %vm367 = vcmp.lt.f32.partialorder %v366, 0.0004427343
        %v368 = vsel %vm367, %v365, %v362
        %v369 = vadd.f32 %v355, %v368
        %370 = vst [vmem:[%s299] sm:$0x3] %v369
        %s371 = sand.u32 %s159, 1
        %s372 = scalar_lea.sflag [#allocation5], %s371
        %s373 = sand.u32 %s159, 1
        %s374 = smul.addr %s373, 2
        %s375 = scalar_lea.vmem [#allocation11], %s374
        // Predicated region
        $region57: #{tpu_custom_call.1} parent=39 // pred_check
          %p376 = pneg %p169
        $region58: #{tpu_custom_call.1} parent=39 // pred_check_branch
          %378 = sbr.rel (%p376) target = $region60
        $region59: #{tpu_custom_call.1} parent=39 // pred_region
          %s380 = ssub.s32 32, 32
          %381 = vsyncadd %s372, %s380
          %s382 = sadd.s32 %s30, %s29
          %s383 = smul.addr %s382, 32
          %s384 = scalar_lea.hbm %s5, %s383
          %s386 = sshll.u32 %s375, 4
          %s387 = int_to_ptr.vmem [resolvable:$true] %s386
          %389 = dma.vmem_to_hbm [thread:$0]  %s387, 32, %s384, %s372
        $region60: #{tpu_custom_call.1} parent=39 // pred_fallthru
          _
      $region40: #{tpu_custom_call.1} parent=5 // pred_fallthru
        _
      %p390 = scmp.le.s32.totalorder 2, %s20
      // Predicated region
      $region61: #{tpu_custom_call.1} parent=5 // pred_check
        %p391 = pneg %p390
      $region62: #{tpu_custom_call.1} parent=5 // pred_check_branch
        %393 = sbr.rel (%p391) target = $region64
      $region63: #{tpu_custom_call.1} parent=5 // pred_region
        %s394 = ssub.s32 %s20, 2
        // Predicated region
        $region65: #{tpu_custom_call.1} parent=63 // pred_check
          %p395 = pneg %p175
        $region66: #{tpu_custom_call.1} parent=63 // pred_check_branch
          %397 = sbr.rel (%p395) target = $region68
        $region67: #{tpu_custom_call.1} parent=63 // pred_region
          %s398 = sand.u32 %s160, 1
          %s399 = scalar_lea.sflag [#allocation5], %s398
          %s400 = sand.u32 %s160, 1
          %s401 = smul.addr %s400, 2
          %s402 = scalar_lea.vmem [#allocation11], %s401
          %403 = dma.done %s399, 32
        $region68: #{tpu_custom_call.1} parent=63 // pred_fallthru
          _
      $region64: #{tpu_custom_call.1} parent=5 // pred_fallthru
        _
    $region6: #{tpu_custom_call.1} parent=1 // loop_footer
      %s24 = sadd.s32 1, %s20
    $region7: #{tpu_custom_call.1} parent=1 // loop_footer_branch
      %19 = sbr.rel target = $region3
    $region8: #{tpu_custom_call.1} parent=1 // loop_exit
      _
    %404 = vsyncpa [#allocation4], 1
    %s405 = scalar_lea.sflag [#allocation4], 1
    %406 = vsyncpa %s405, 1
    %407 = vsyncpa [#allocation5], 1
    %s408 = scalar_lea.sflag [#allocation5], 1
    %409 = vsyncpa %s408, 1
    %410 = vsyncpa [#allocation6], 1
    %s411 = scalar_lea.sflag [#allocation6], 1
    %412 = vsyncpa %s411, 1
    %413 = vsyncpa [#allocation9], 1

</llo_original>
